<compile_context>
chip_gen: v5e
topology: v5e:2x2
jax: 0.10.0
libtpu: 0.0.40
codegen_flags: <defaults>
</compile_context>

<pallas_src>
import math

import jax
import jax.numpy as jnp
from jax.experimental import pallas as pl
from jax.experimental.pallas import tpu as pltpu

LANE = 128
SUBLANE = 8


def _round_up(x: int, m: int) -> int:
    return ((x + m - 1) // m) * m


def _cdiv(a: int, b: int) -> int:
    return -(-a // b)


def _mlp_kernel(x_ref, w1_ref, b1_ref, w2_ref, b2_ref, o_ref):
    # x_ref : (TB, D)   f32  -> cast to bf16 per tile (no wrapper-side HBM pass)
    # w1_ref: (D, Hp)   bf16    b1_ref: (1, Hp) f32
    # w2_ref: (Hp, Cp)  bf16    b2_ref: (1, Cp) f32
    # o_ref : (TB, Cp)  bf16   (lane-dense 128-wide, unmasked stores)
    x = x_ref[...].astype(w1_ref.dtype)                          # f32 -> bf16 (VPU)
    h = jnp.dot(x, w1_ref[...], preferred_element_type=jnp.float32) + b1_ref[...]
    h = jnp.maximum(h, 0.0)                                       # ReLU in f32
    out = jnp.dot(h.astype(w2_ref.dtype), w2_ref[...],
                  preferred_element_type=jnp.float32) + b2_ref[...]
    o_ref[...] = out.astype(o_ref.dtype)


def _vmem_budget_bytes() -> int:
    # Generation-aware budget: v7x has 64 MiB physical VMEM per TensorCore,
    # v5e/v6e have 128 MiB. Leave headroom for compiler-internal scratch.
    try:
        cap = int(pltpu.get_tpu_info().vmem_capacity_bytes)
    except Exception:  # info unavailable -> conservative (v7x-sized) cap
        cap = 64 * 1024 * 1024
    return max(min(int(cap * 0.75), 100 * 1024 * 1024), 16 * 1024 * 1024)


def _pick_batch_tile(B, D, H_pad, C_pad, block_b, vmem_budget):
    """Largest legal batch tile under the VMEM budget; >= 2 tiles when possible."""
    # Per-row VMEM bytes: double-buffered f32 x, double-buffered bf16 out, plus
    # in-kernel temporaries (bf16 x copy, f32 + bf16 h, f32 out).
    per_row = (2 * D * 4) + (2 * C_pad * 2) + (D * 2 + H_pad * 6 + C_pad * 4)
    # Resident weights / biases (single-buffered, constant index_map).
    fixed = D * H_pad * 2 + H_pad * 4 + H_pad * C_pad * 2 + C_pad * 4
    tb_vmem = max((vmem_budget - fixed) // per_row, SUBLANE)
    tb_vmem = (tb_vmem // SUBLANE) * SUBLANE
    tb_max = max(min(block_b, tb_vmem), SUBLANE)

    n_tiles = _cdiv(B, tb_max)
    if n_tiles == 1 and B >= 2 * SUBLANE:
        n_tiles = 2                      # v7x megacore: feed both TensorCores
    # Shrink TB toward cdiv(B, n_tiles) so the last (partial) tile wastes < 8 rows.
    tb = _round_up(_cdiv(B, n_tiles), SUBLANE)
    n_tiles = _cdiv(B, tb)
    return tb, n_tiles


def downstream_forward(x, w1, b1, w2, b2, *, block_b=4096,
                       compute_dtype=jnp.bfloat16, out_dtype=jnp.float32):
    """Forward pass of DownstreamModel.

    x : (B, ...) with prod(trailing dims) == input_dim (flattened here).
    w1: (input_dim, 32), b1: (32,), w2: (32, num_classes), b2: (num_classes,)
        -- transposed PyTorch nn.Linear layout (in, out).
    Returns (B, num_classes) in out_dtype.
    """
    B = x.shape[0]
    x2d = x.reshape(B, -1)                       # flatten only; keep f32, no cast/copy
    D = x2d.shape[1]
    H = w1.shape[1]
    C = w2.shape[1]

    H_pad = _round_up(H, LANE)                   # 32 -> 128 : full-lane hidden
    C_pad = _round_up(C, LANE)                   # e.g. 8 -> 128 : lane-dense output

    vmem_budget = _vmem_budget_bytes()
    TB, n_tiles = _pick_batch_tile(B, D, H_pad, C_pad, block_b, vmem_budget)

    # Tiny parameters: pad / cast once in the wrapper. Zero padding is exact:
    # padded hidden cols get bias 0 -> relu(0) = 0 -> contribute nothing; padded
    # class cols are sliced off below.
    w1_p = jnp.pad(w1.astype(compute_dtype), ((0, 0), (0, H_pad - H)))
    b1_p = jnp.pad(b1.astype(jnp.float32), (0, H_pad - H)).reshape(1, H_pad)
    w2_p = jnp.pad(w2.astype(compute_dtype), ((0, H_pad - H), (0, C_pad - C)))
    b2_p = jnp.pad(b2.astype(jnp.float32), (0, C_pad - C)).reshape(1, C_pad)

    flops = 2 * B * (D * H_pad + H_pad * C_pad)
    bytes_accessed = (x2d.size * x2d.dtype.itemsize
                      + w1_p.size * 2 + w2_p.size * 2
                      + b1_p.size * 4 + b2_p.size * 4
                      + B * C_pad * 2)

    def _run(single_buffer_weights: bool):
        wkw = dict(pipeline_mode=pl.Buffered(1)) if single_buffer_weights else {}
        return pl.pallas_call(
            _mlp_kernel,
            out_shape=jax.ShapeDtypeStruct((B, C_pad), compute_dtype),
            grid=(n_tiles,),
            in_specs=[
                # x: tiled over batch; D is the full minor dim (f32, cast in-kernel).
                pl.BlockSpec((TB, D), lambda i: (i, 0)),
                # Weights / biases: full-extent blocks with constant index_map
                # (DMA'd once, kept resident; never re-fetched across grid steps).
                pl.BlockSpec((D, H_pad), lambda i: (0, 0), **wkw),
                pl.BlockSpec((1, H_pad), lambda i: (0, 0), **wkw),
                pl.BlockSpec((H_pad, C_pad), lambda i: (0, 0), **wkw),
                pl.BlockSpec((1, C_pad), lambda i: (0, 0), **wkw),
            ],
            out_specs=pl.BlockSpec((TB, C_pad), lambda i: (i, 0)),
            compiler_params=pltpu.CompilerParams(
                dimension_semantics=("parallel",),
                vmem_limit_bytes=int(vmem_budget)),
            cost_estimate=pl.CostEstimate(
                flops=flops, transcendentals=0, bytes_accessed=bytes_accessed),
        )(x2d, w1_p, b1_p, w2_p, b2_p)

    try:
        out = _run(True)      # single-buffered resident weights (frees VMEM)
    except Exception:
        out = _run(False)     # fallback: default buffering for the weight blocks

    # Strip class padding; cast the small (B, C) slice back to f32 outside the kernel.
    return out[:, :C].astype(out_dtype)


def reference_forward_f32(x, w1, b1, w2, b2):
    B = x.shape[0]
    x2d = x.reshape(B, -1).astype(jnp.float32)
    h = jnp.maximum(x2d @ w1 + b1, 0.0)
    return h @ w2 + b2


def reference_forward_bf16(x, w1, b1, w2, b2):
    # Mirrors the kernel's mixed precision: bf16 matmul inputs, f32 accumulation,
    # f32 bias/ReLU, bf16 output store.
    B = x.shape[0]
    x2d = x.reshape(B, -1).astype(jnp.bfloat16)
    h = jnp.dot(x2d, w1.astype(jnp.bfloat16),
                preferred_element_type=jnp.float32) + b1.astype(jnp.float32)
    h = jnp.maximum(h, 0.0)
    out = jnp.dot(h.astype(jnp.bfloat16), w2.astype(jnp.bfloat16),
                  preferred_element_type=jnp.float32) + b2.astype(jnp.float32)
    return out.astype(jnp.bfloat16).astype(jnp.float32)


if __name__ == "__main__":
    key = jax.random.PRNGKey(0)
    k_x, k_w1, k_b1, k_w2, k_b2 = jax.random.split(key, 5)

    # Small shapes: batch=8, input tensor (8, 4, 4, 4) -> input_dim=64,
    # hidden=32 (fixed by the module), num_classes=8.
    B, C_in, S = 8, 4, 4
    input_dim = C_in * S * S          # 64
    hidden = 32
    num_classes = 8

    x = jax.random.normal(k_x, (B, C_in, S, S), dtype=jnp.float32)

    # Deterministic parameter init (PyTorch-Linear-like uniform fan-in scaling).
    lim1 = 1.0 / math.sqrt(input_dim)
    lim2 = 1.0 / math.sqrt(hidden)
    w1 = jax.random.uniform(k_w1, (input_dim, hidden), minval=-lim1, maxval=lim1)
    b1 = jax.random.uniform(k_b1, (hidden,), minval=-lim1, maxval=lim1)
    w2 = jax.random.uniform(k_w2, (hidden, num_classes), minval=-lim2, maxval=lim2)
    b2 = jax.random.uniform(k_b2, (num_classes,), minval=-lim2, maxval=lim2)

    out = downstream_forward(x, w1, b1, w2, b2)
    out = jax.block_until_ready(out)
    assert out.shape == (B, num_classes), out.shape

    # Check against a reference that uses the same bf16-in / f32-accumulate /
    # bf16-store recipe as the kernel.
    ref_bf16 = reference_forward_bf16(x, w1, b1, w2, b2)
    assert jnp.allclose(out, ref_bf16, atol=5e-3, rtol=5e-3), \
        "mismatch vs bf16-matched reference"

    # Looser check against the pure-f32 PyTorch-equivalent math (bf16 rounding of
    # matmul inputs / output store is the only difference).
    ref_f32 = reference_forward_f32(x, w1, b1, w2, b2)
    assert jnp.allclose(out, ref_f32, atol=5e-2, rtol=5e-2), \
        "mismatch vs f32 reference"

    print("KERNEL_OK")
</pallas_src>

<mosaic_0001>
module attributes {stable_mosaic.version = 11 : i64} {
  func.func @_mlp_kernel(%arg0: i32, %arg1: memref<8x64xf32, #tpu.memory_space<vmem>>, %arg2: memref<64x128xbf16, #tpu.memory_space<vmem>>, %arg3: memref<1x128xf32, #tpu.memory_space<vmem>>, %arg4: memref<128x128xbf16, #tpu.memory_space<vmem>>, %arg5: memref<1x128xf32, #tpu.memory_space<vmem>>, %arg6: memref<8x128xbf16, #tpu.memory_space<vmem>>) attributes {dimension_semantics = [#tpu.dimension_semantics<parallel>], iteration_bounds = array<i64: 1>, scalar_prefetch = 0 : i64, scratch_operands = 0 : i64, tpu.core_type = #tpu.core_type<tc>, window_params = [{transform_indices = @transform_0, window_bounds = array<i64: 8, 64>}, {pipeline_mode = #tpu.pipeline_mode<synchronous>, transform_indices = @transform_1, window_bounds = array<i64: 64, 128>}, {pipeline_mode = #tpu.pipeline_mode<synchronous>, transform_indices = @transform_2, window_bounds = array<i64: 1, 128>}, {pipeline_mode = #tpu.pipeline_mode<synchronous>, transform_indices = @transform_3, window_bounds = array<i64: 128, 128>}, {pipeline_mode = #tpu.pipeline_mode<synchronous>, transform_indices = @transform_4, window_bounds = array<i64: 1, 128>}, {transform_indices = @transform_5, window_bounds = array<i64: 8, 128>}]} {
    %c0 = arith.constant 0 : index
    %c0_0 = arith.constant 0 : index
    %0 = vector.load %arg1[%c0, %c0_0] : memref<8x64xf32, #tpu.memory_space<vmem>>, vector<8x64xf32>
    %1 = arith.truncf %0 : vector<8x64xf32> to vector<8x64xbf16>
    %c0_1 = arith.constant 0 : index
    %c0_2 = arith.constant 0 : index
    %2 = vector.load %arg2[%c0_1, %c0_2] : memref<64x128xbf16, #tpu.memory_space<vmem>>, vector<64x128xbf16>
    %cst = arith.constant dense<0.000000e+00> : vector<8x128xf32>
    %3 = tpu.matmul %1, %2, %cst {dimension_numbers = #tpu.dot_dimension_numbers<[1], [0], [0], [1], [0, 0, 1, 1], [], []>} : vector<8x64xbf16>, vector<64x128xbf16>, vector<8x128xf32> -> vector<8x128xf32>
    %c0_3 = arith.constant 0 : index
    %c0_4 = arith.constant 0 : index
    %4 = vector.load %arg3[%c0_3, %c0_4] : memref<1x128xf32, #tpu.memory_space<vmem>>, vector<1x128xf32>
    %5 = vector.broadcast %4 : vector<1x128xf32> to vector<8x128xf32>
    %6 = arith.addf %3, %5 : vector<8x128xf32>
    %cst_5 = arith.constant 0.000000e+00 : f32
    %7 = vector.broadcast %cst_5 : f32 to vector<8x128xf32>
    %8 = arith.maximumf %6, %7 : vector<8x128xf32>
    %9 = arith.truncf %8 : vector<8x128xf32> to vector<8x128xbf16>
    %c0_6 = arith.constant 0 : index
    %c0_7 = arith.constant 0 : index
    %10 = vector.load %arg4[%c0_6, %c0_7] : memref<128x128xbf16, #tpu.memory_space<vmem>>, vector<128x128xbf16>
    %cst_8 = arith.constant dense<0.000000e+00> : vector<8x128xf32>
    %11 = tpu.matmul %9, %10, %cst_8 {dimension_numbers = #tpu.dot_dimension_numbers<[1], [0], [0], [1], [0, 0, 1, 1], [], []>} : vector<8x128xbf16>, vector<128x128xbf16>, vector<8x128xf32> -> vector<8x128xf32>
    %c0_9 = arith.constant 0 : index
    %c0_10 = arith.constant 0 : index
    %12 = vector.load %arg5[%c0_9, %c0_10] : memref<1x128xf32, #tpu.memory_space<vmem>>, vector<1x128xf32>
    %13 = vector.broadcast %12 : vector<1x128xf32> to vector<8x128xf32>
    %14 = arith.addf %11, %13 : vector<8x128xf32>
    %15 = arith.truncf %14 : vector<8x128xf32> to vector<8x128xbf16>
    %c0_11 = arith.constant 0 : index
    %c0_12 = arith.constant 0 : index
    %16 = vector.load %arg6[%c0_11, %c0_12] : memref<8x128xbf16, #tpu.memory_space<vmem>>, vector<8x128xbf16>
    tpu.vector_store %arg6[%c0_11, %c0_12], %15 {strides = array<i32>} : memref<8x128xbf16, #tpu.memory_space<vmem>>, vector<8x128xbf16>,
    return
  }
  func.func @transform_0(%arg0: i32) -> (i32, i32) {
    %c0_i32 = arith.constant 0 : i32
    %c0_i32_0 = arith.constant 0 : i32
    return %arg0, %c0_i32 : i32, i32
  }
  func.func @transform_1(%arg0: i32) -> (i32, i32) {
    %c0_i32 = arith.constant 0 : i32
    %c0_i32_0 = arith.constant 0 : i32
    %c0_i32_1 = arith.constant 0 : i32
    return %c0_i32, %c0_i32_0 : i32, i32
  }
  func.func @transform_2(%arg0: i32) -> (i32, i32) {
    %c0_i32 = arith.constant 0 : i32
    %c0_i32_0 = arith.constant 0 : i32
    %c0_i32_1 = arith.constant 0 : i32
    return %c0_i32, %c0_i32_0 : i32, i32
  }
  func.func @transform_3(%arg0: i32) -> (i32, i32) {
    %c0_i32 = arith.constant 0 : i32
    %c0_i32_0 = arith.constant 0 : i32
    %c0_i32_1 = arith.constant 0 : i32
    return %c0_i32, %c0_i32_0 : i32, i32
  }
  func.func @transform_4(%arg0: i32) -> (i32, i32) {
    %c0_i32 = arith.constant 0 : i32
    %c0_i32_0 = arith.constant 0 : i32
    %c0_i32_1 = arith.constant 0 : i32
    return %c0_i32, %c0_i32_0 : i32, i32
  }
  func.func @transform_5(%arg0: i32) -> (i32, i32) {
    %c0_i32 = arith.constant 0 : i32
    %c0_i32_0 = arith.constant 0 : i32
    return %arg0, %c0_i32 : i32, i32
  }
}

module attributes {stable_mosaic.version = 11 : i64} {
  func.func @_mlp_kernel(%arg0: i32, %arg1: memref<8x64xf32, #tpu.memory_space<vmem>>, %arg2: memref<64x128xbf16, #tpu.memory_space<vmem>>, %arg3: memref<1x128xf32, #tpu.memory_space<vmem>>, %arg4: memref<128x128xbf16, #tpu.memory_space<vmem>>, %arg5: memref<1x128xf32, #tpu.memory_space<vmem>>, %arg6: memref<8x128xbf16, #tpu.memory_space<vmem>>) attributes {dimension_semantics = [#tpu.dimension_semantics<parallel>], iteration_bounds = array<i64: 1>, scalar_prefetch = 0 : i64, scratch_operands = 0 : i64, tpu.core_type = #tpu.core_type<tc>, window_params = [{transform_indices = @transform_0, window_bounds = array<i64: 8, 64>}, {pipeline_mode = #tpu.pipeline_mode<synchronous>, transform_indices = @transform_1, window_bounds = array<i64: 64, 128>}, {pipeline_mode = #tpu.pipeline_mode<synchronous>, transform_indices = @transform_2, window_bounds = array<i64: 1, 128>}, {pipeline_mode = #tpu.pipeline_mode<synchronous>, transform_indices = @transform_3, window_bounds = array<i64: 128, 128>}, {pipeline_mode = #tpu.pipeline_mode<synchronous>, transform_indices = @transform_4, window_bounds = array<i64: 1, 128>}, {transform_indices = @transform_5, window_bounds = array<i64: 8, 128>}]} {
    %c0 = arith.constant 0 : index
    %c0_0 = arith.constant 0 : index
    %0 = vector.load %arg1[%c0, %c0_0] : memref<8x64xf32, #tpu.memory_space<vmem>>, vector<8x64xf32>
    %1 = arith.truncf %0 : vector<8x64xf32> to vector<8x64xbf16>
    %c0_1 = arith.constant 0 : index
    %c0_2 = arith.constant 0 : index
    %2 = vector.load %arg2[%c0_1, %c0_2] : memref<64x128xbf16, #tpu.memory_space<vmem>>, vector<64x128xbf16>
    %cst = arith.constant dense<0.000000e+00> : vector<8x128xf32>
    %3 = tpu.matmul %1, %2, %cst {dimension_numbers = #tpu.dot_dimension_numbers<[1], [0], [0], [1], [0, 0, 1, 1], [], []>} : vector<8x64xbf16>, vector<64x128xbf16>, vector<8x128xf32> -> vector<8x128xf32>
    %c0_3 = arith.constant 0 : index
    %c0_4 = arith.constant 0 : index
    %4 = vector.load %arg3[%c0_3, %c0_4] : memref<1x128xf32, #tpu.memory_space<vmem>>, vector<1x128xf32>
    %5 = vector.broadcast %4 : vector<1x128xf32> to vector<8x128xf32>
    %6 = arith.addf %3, %5 : vector<8x128xf32>
    %cst_5 = arith.constant 0.000000e+00 : f32
    %7 = vector.broadcast %cst_5 : f32 to vector<8x128xf32>
    %8 = arith.maximumf %6, %7 : vector<8x128xf32>
    %9 = arith.truncf %8 : vector<8x128xf32> to vector<8x128xbf16>
    %c0_6 = arith.constant 0 : index
    %c0_7 = arith.constant 0 : index
    %10 = vector.load %arg4[%c0_6, %c0_7] : memref<128x128xbf16, #tpu.memory_space<vmem>>, vector<128x128xbf16>
    %cst_8 = arith.constant dense<0.000000e+00> : vector<8x128xf32>
    %11 = tpu.matmul %9, %10, %cst_8 {dimension_numbers = #tpu.dot_dimension_numbers<[1], [0], [0], [1], [0, 0, 1, 1], [], []>} : vector<8x128xbf16>, vector<128x128xbf16>, vector<8x128xf32> -> vector<8x128xf32>
    %c0_9 = arith.constant 0 : index
    %c0_10 = arith.constant 0 : index
    %12 = vector.load %arg5[%c0_9, %c0_10] : memref<1x128xf32, #tpu.memory_space<vmem>>, vector<1x128xf32>
    %13 = vector.broadcast %12 : vector<1x128xf32> to vector<8x128xf32>
    %14 = arith.addf %11, %13 : vector<8x128xf32>
    %15 = arith.truncf %14 : vector<8x128xf32> to vector<8x128xbf16>
    %c0_11 = arith.constant 0 : index
    %c0_12 = arith.constant 0 : index
    %16 = vector.load %arg6[%c0_11, %c0_12] : memref<8x128xbf16, #tpu.memory_space<vmem>>, vector<8x128xbf16>
    tpu.vector_store %arg6[%c0_11, %c0_12], %15 {strides = array<i32>} : memref<8x128xbf16, #tpu.memory_space<vmem>>, vector<8x128xbf16>,
    return
  }
  func.func @transform_0(%arg0: i32) -> (i32, i32) {
    %c0_i32 = arith.constant 0 : i32
    %c0_i32_0 = arith.constant 0 : i32
    return %arg0, %c0_i32 : i32, i32
  }
  func.func @transform_1(%arg0: i32) -> (i32, i32) {
    %c0_i32 = arith.constant 0 : i32
    %c0_i32_0 = arith.constant 0 : i32
    %c0_i32_1 = arith.constant 0 : i32
    return %c0_i32, %c0_i32_0 : i32, i32
  }
  func.func @transform_2(%arg0: i32) -> (i32, i32) {
    %c0_i32 = arith.constant 0 : i32
    %c0_i32_0 = arith.constant 0 : i32
    %c0_i32_1 = arith.constant 0 : i32
    return %c0_i32, %c0_i32_0 : i32, i32
  }
  func.func @transform_3(%arg0: i32) -> (i32, i32) {
    %c0_i32 = arith.constant 0 : i32
    %c0_i32_0 = arith.constant 0 : i32
    %c0_i32_1 = arith.constant 0 : i32
    return %c0_i32, %c0_i32_0 : i32, i32
  }
  func.func @transform_4(%arg0: i32) -> (i32, i32) {
    %c0_i32 = arith.constant 0 : i32
    %c0_i32_0 = arith.constant 0 : i32
    %c0_i32_1 = arith.constant 0 : i32
    return %c0_i32, %c0_i32_0 : i32, i32
  }
  func.func @transform_5(%arg0: i32) -> (i32, i32) {
    %c0_i32 = arith.constant 0 : i32
    %c0_i32_0 = arith.constant 0 : i32
    return %arg0, %c0_i32 : i32, i32
  }
}

</mosaic_0001>

<llo_original>
// kernel: tpu_custom_call.1
$region0: #{tpu_custom_call.1}
  #allocation0 [shape = 'u32[]', space=smem, size = 0x4, offset = 0x4, fixed_abs, tag = 'smem constant byte address 0x4 - core index']
  #allocation1 [shape = 'u32[72,128]{1,0:T(1,128)}', space=vmem, size = 0x9000, scoped, tag = 'internal scratch']
  %s0 = inlined_call_operand.hbm [shape: f32[8,64], index: 0, kind: input, shape index: {}]
  %s1 = inlined_call_operand.hbm [shape: bf16[64,128], index: 1, kind: input, shape index: {}]
  %s2 = inlined_call_operand.vmem [shape: f32[1,128], index: 2, kind: input, shape index: {}]
  %s3 = inlined_call_operand.hbm [shape: bf16[128,128], index: 3, kind: input, shape index: {}]
  %s4 = inlined_call_operand.vmem [shape: f32[1,128], index: 4, kind: input, shape index: {}]
  %s5 = inlined_call_operand.hbm [shape: bf16[8,128], index: 5, kind: output, shape index: {}]
  %s6 = sld [smem:[#allocation0]]
  $region42: #{tpu_custom_call.1} parent=0
    _
  %s8 = ssub.s32 1, %s6
  %s9 = scalar_select 0, %s8, %s6
  $region1: #{tpu_custom_call.1} parent=0
    #allocation2 [shape = 'u8[4096]{0}', space=vmem, size = 0x1000, scoped, tag = 'input window, operand 0, single buffered']
    #allocation3 [shape = 's32[1]{0}', space=sflag, size = 0x4, scoped, tag = 'scoped memory for tpu_custom_call.1']
    #allocation4 [shape = 's32[1]{0}', space=sflag, size = 0x4, scoped, tag = 'scoped memory for tpu_custom_call.1']
    #allocation5 [shape = 'u8[16384]{0}', space=vmem, size = 0x4000, scoped, tag = 'input window, operand 1, single buffered']
    #allocation6 [shape = 's32[1]{0}', space=sflag, size = 0x4, scoped, tag = 'scoped memory for tpu_custom_call.1']
    #allocation7 [shape = 'u8[32768]{0}', space=vmem, size = 0x8000, scoped, tag = 'input window, operand 3, single buffered']
    #allocation8 [shape = 'u8[2048]{0}', space=vmem, size = 0x800, scoped, tag = 'output window, operand 0, single buffered']
    %10 = vsyncpa [#allocation3], 0
    %11 = vsyncpa [#allocation6], 0
    %12 = vsyncpa [#allocation4], 0
    // Predicated region
    $region2: #{tpu_custom_call.1} parent=1 // pred_check
      _
    $region3: #{tpu_custom_call.1} parent=1 // pred_check_branch
      %14 = sbr.rel (0) target = $region5
    $region4: #{tpu_custom_call.1} parent=1 // pred_region
      %16 = vsyncadd [#allocation3], 0
      %s18 = sshll.u32 %s0, 4
      %s19 = int_to_ptr.hbm [resolvable:$true] %s18
      %s20 = sshll.u32 [#allocation2], 4
      %s21 = int_to_ptr.vmem [resolvable:$true] %s20
      %23 = dma.hbm_to_vmem [thread:$0]  %s19, 128, %s21, [#allocation3]
    $region5: #{tpu_custom_call.1} parent=1 // pred_fallthru
      _
    // Predicated region
    $region6: #{tpu_custom_call.1} parent=1 // pred_check
      _
    $region7: #{tpu_custom_call.1} parent=1 // pred_check_branch
      %25 = sbr.rel (0) target = $region9
    $region8: #{tpu_custom_call.1} parent=1 // pred_region
      %27 = vsyncadd [#allocation6], 0
      %s28 = sshll.u32 %s1, 4
      %s29 = int_to_ptr.hbm [resolvable:$true] %s28
      %s30 = sshll.u32 [#allocation5], 4
      %s31 = int_to_ptr.vmem [resolvable:$true] %s30
      %36 = dma.hbm_to_vmem [thread:$0]  %s29, 512, %s31, [#allocation6], 64, 64, 4
    $region9: #{tpu_custom_call.1} parent=1 // pred_fallthru
      _
    // Predicated region
    $region10: #{tpu_custom_call.1} parent=1 // pred_check
      _
    $region11: #{tpu_custom_call.1} parent=1 // pred_check_branch
      %38 = sbr.rel (0) target = $region13
    $region12: #{tpu_custom_call.1} parent=1 // pred_region
      _
    $region13: #{tpu_custom_call.1} parent=1 // pred_fallthru
      _
    // Predicated region
    $region14: #{tpu_custom_call.1} parent=1 // pred_check
      _
    $region15: #{tpu_custom_call.1} parent=1 // pred_check_branch
      %40 = sbr.rel (0) target = $region17
    $region16: #{tpu_custom_call.1} parent=1 // pred_region
      %42 = vsyncadd [#allocation6], 0
      %s43 = sshll.u32 %s3, 4
      %s44 = int_to_ptr.hbm [resolvable:$true] %s43
      %s45 = sshll.u32 [#allocation7], 4
      %s46 = int_to_ptr.vmem [resolvable:$true] %s45
      %51 = dma.hbm_to_vmem [thread:$0]  %s44, 1024, %s46, [#allocation6], 64, 64, 4
    $region17: #{tpu_custom_call.1} parent=1 // pred_fallthru
      _
    // Predicated region
    $region18: #{tpu_custom_call.1} parent=1 // pred_check
      _
    $region19: #{tpu_custom_call.1} parent=1 // pred_check_branch
      %53 = sbr.rel (0) target = $region21
    $region20: #{tpu_custom_call.1} parent=1 // pred_region
      _
    $region21: #{tpu_custom_call.1} parent=1 // pred_fallthru
      _
    // Predicated region
    $region22: #{tpu_custom_call.1} parent=1 // pred_check
      _
    $region23: #{tpu_custom_call.1} parent=1 // pred_check_branch
      %55 = sbr.rel (0) target = $region25
    $region24: #{tpu_custom_call.1} parent=1 // pred_region
      %57 = dma.done [#allocation3], 128
    $region25: #{tpu_custom_call.1} parent=1 // pred_fallthru
      _
    // Predicated region
    $region26: #{tpu_custom_call.1} parent=1 // pred_check
      _
    $region27: #{tpu_custom_call.1} parent=1 // pred_check_branch
      %59 = sbr.rel (0) target = $region29
    $region28: #{tpu_custom_call.1} parent=1 // pred_region
      %61 = dma.done [#allocation6], 512
    $region29: #{tpu_custom_call.1} parent=1 // pred_fallthru
      _
    // Predicated region
    $region30: #{tpu_custom_call.1} parent=1 // pred_check
      _
    $region31: #{tpu_custom_call.1} parent=1 // pred_check_branch
      %63 = sbr.rel (0) target = $region33
    $region32: #{tpu_custom_call.1} parent=1 // pred_region
      %65 = dma.done [#allocation6], 1024
    $region33: #{tpu_custom_call.1} parent=1 // pred_fallthru
      _
    %v67 = vld [vmem:[#allocation2] sm:$0xff]
    %v68 = vpack.c.bf16 %v67, %v67
    %v69 = vld [vmem:[#allocation5] sm:$0xf]
    %v70 = vld [vmem:[#allocation5 + $0x4] sm:$0xf]
    %v71 = vld [vmem:[#allocation5 + $0x8] sm:$0xf]
    %v72 = vld [vmem:[#allocation5 + $0xc] sm:$0xf]
    %v73 = vld [vmem:[#allocation5 + $0x10] sm:$0xf]
    %v74 = vld [vmem:[#allocation5 + $0x14] sm:$0xf]
    %v75 = vld [vmem:[#allocation5 + $0x18] sm:$0xf]
    %v76 = vld [vmem:[#allocation5 + $0x1c] sm:$0xf]
    %v77 = vld [vmem:[%s2] sm:$0x1]
    %v79 = vperm.slane %v77, 0
    %v89 = vunpack.c.l.b16 %v69
    %v90 = vunpack.c.l.b16 %v70
    %v91 = vunpack.c.l.b16 %v71
    %v92 = vunpack.c.l.b16 %v72
    %v93 = vunpack.c.l.b16 %v73
    %v94 = vunpack.c.l.b16 %v74
    %v95 = vunpack.c.l.b16 %v75
    %v96 = vunpack.c.l.b16 %v76
    %v97 = vpack.c.b16 %v90, %v89
    %v98 = vpack.c.b16 %v92, %v91
    %v99 = vpack.c.b16 %v94, %v93
    %v100 = vpack.c.b16 %v96, %v95
    %vm105 = vcmask 523264
    %v107 = vsel %vm105, %v68, 0
    %109 = vmatpush.bf16.msra.mxu0 0
    %110 = vmatpush.bf16.msra.mxu0 0
    %111 = vmatpush.bf16.msra.mxu0 0
    %112 = vmatpush.bf16.msra.mxu0 0
    %113 = vmatpush.bf16.msra.mxu0 %v100
    %114 = vmatpush.bf16.msra.mxu0 %v99
    %115 = vmatpush.bf16.msra.mxu0 %v98
    %116 = vmatpush.bf16.msra.mxu0 %v97
    %117 = vmatmul.bf16.gmra.mxu0 %v107
    %v118 = vpop.f32.mrf.mxu0
    %v119 = vadd.f32 %v79, %v118
    %v120 = vpop.f32.mrf.mxu0
    %121 = vdwg.mxu0
    %v122 = vmax.f32 %v119, 0.0
    %v123 = vpack.c.bf16 %v122, %v122
    %v124 = vld [vmem:[#allocation7] sm:$0xf]
    %v125 = vld [vmem:[#allocation7 + $0x4] sm:$0xf]
    %v126 = vld [vmem:[#allocation7 + $0x8] sm:$0xf]
    %v127 = vld [vmem:[#allocation7 + $0xc] sm:$0xf]
    %v128 = vld [vmem:[#allocation7 + $0x10] sm:$0xf]
    %v129 = vld [vmem:[#allocation7 + $0x14] sm:$0xf]
    %v130 = vld [vmem:[#allocation7 + $0x18] sm:$0xf]
    %v131 = vld [vmem:[#allocation7 + $0x1c] sm:$0xf]
    %v132 = vld [vmem:[#allocation7 + $0x20] sm:$0xf]
    %v133 = vld [vmem:[#allocation7 + $0x24] sm:$0xf]
    %v134 = vld [vmem:[#allocation7 + $0x28] sm:$0xf]
    %v135 = vld [vmem:[#allocation7 + $0x2c] sm:$0xf]
    %v136 = vld [vmem:[#allocation7 + $0x30] sm:$0xf]
    %v137 = vld [vmem:[#allocation7 + $0x34] sm:$0xf]
    %v138 = vld [vmem:[#allocation7 + $0x38] sm:$0xf]
    %v139 = vld [vmem:[#allocation7 + $0x3c] sm:$0xf]
    %v140 = vld [vmem:[%s4] sm:$0x1]
    %v142 = vperm.slane %v140, 0
    %v160 = vunpack.c.l.b16 %v124
    %v161 = vunpack.c.l.b16 %v125
    %v162 = vunpack.c.l.b16 %v126
    %v163 = vunpack.c.l.b16 %v127
    %v164 = vunpack.c.l.b16 %v128
    %v165 = vunpack.c.l.b16 %v129
    %v166 = vunpack.c.l.b16 %v130
    %v167 = vunpack.c.l.b16 %v131
    %v168 = vunpack.c.l.b16 %v132
    %v169 = vunpack.c.l.b16 %v133
    %v170 = vunpack.c.l.b16 %v134
    %v171 = vunpack.c.l.b16 %v135
    %v172 = vunpack.c.l.b16 %v136
    %v173 = vunpack.c.l.b16 %v137
    %v174 = vunpack.c.l.b16 %v138
    %v175 = vunpack.c.l.b16 %v139
    %v176 = vpack.c.b16 %v161, %v160
    %v177 = vpack.c.b16 %v163, %v162
    %v178 = vpack.c.b16 %v165, %v164
    %v179 = vpack.c.b16 %v167, %v166
    %v180 = vpack.c.b16 %v169, %v168
    %v181 = vpack.c.b16 %v171, %v170
    %v182 = vpack.c.b16 %v173, %v172
    %v183 = vpack.c.b16 %v175, %v174
    %192 = vmatpush.bf16.msra.mxu0 %v183
    %193 = vmatpush.bf16.msra.mxu0 %v182
    %194 = vmatpush.bf16.msra.mxu0 %v181
    %195 = vmatpush.bf16.msra.mxu0 %v180
    %196 = vmatpush.bf16.msra.mxu0 %v179
    %197 = vmatpush.bf16.msra.mxu0 %v178
    %198 = vmatpush.bf16.msra.mxu0 %v177
    %199 = vmatpush.bf16.msra.mxu0 %v176
    %200 = vmatmul.bf16.gmra.mxu0 %v123
    %v201 = vpop.f32.mrf.mxu0
    %v202 = vadd.f32 %v142, %v201
    %v203 = vpop.f32.mrf.mxu0
    %204 = vdwg.mxu0
    %v205 = vpack.c.bf16 %v202, %v202
    %206 = vst [vmem:[#allocation8] sm:$0xf] %v205
    // Predicated region
    $region34: #{tpu_custom_call.1} parent=1 // pred_check
      _
    $region35: #{tpu_custom_call.1} parent=1 // pred_check_branch
      %208 = sbr.rel (0) target = $region37
    $region36: #{tpu_custom_call.1} parent=1 // pred_region
      %210 = vsyncadd [#allocation4], 0
      %s212 = sshll.u32 [#allocation8], 4
      %s213 = int_to_ptr.vmem [resolvable:$true] %s212
      %s214 = sshll.u32 %s5, 4
      %s215 = int_to_ptr.hbm [resolvable:$true] %s214
      %217 = dma.vmem_to_hbm [thread:$0]  %s213, 64, %s215, [#allocation4]
    $region37: #{tpu_custom_call.1} parent=1 // pred_fallthru
      _
    // Predicated region
    $region38: #{tpu_custom_call.1} parent=1 // pred_check
      _
    $region39: #{tpu_custom_call.1} parent=1 // pred_check_branch
      %219 = sbr.rel (0) target = $region41
    $region40: #{tpu_custom_call.1} parent=1 // pred_region
      %221 = dma.done [#allocation4], 64
    $region41: #{tpu_custom_call.1} parent=1 // pred_fallthru
      _
    %222 = vsyncpa [#allocation3], 1
    %223 = vsyncpa [#allocation6], 1
    %224 = vsyncpa [#allocation4], 1

// kernel: tpu_custom_call.1
$region0: #{tpu_custom_call.1}
  #allocation0 [shape = 'u32[]', space=smem, size = 0x4, offset = 0x4, fixed_abs, tag = 'smem constant byte address 0x4 - core index']
  #allocation1 [shape = 'u32[72,128]{1,0:T(1,128)}', space=vmem, size = 0x9000, scoped, tag = 'internal scratch']
  %s0 = inlined_call_operand.hbm [shape: f32[8,64], index: 0, kind: input, shape index: {}]
  %s1 = inlined_call_operand.hbm [shape: bf16[64,128], index: 1, kind: input, shape index: {}]
  %s2 = inlined_call_operand.vmem [shape: f32[1,128], index: 2, kind: input, shape index: {}]
  %s3 = inlined_call_operand.hbm [shape: bf16[128,128], index: 3, kind: input, shape index: {}]
  %s4 = inlined_call_operand.vmem [shape: f32[1,128], index: 4, kind: input, shape index: {}]
  %s5 = inlined_call_operand.hbm [shape: bf16[8,128], index: 5, kind: output, shape index: {}]
  %s6 = sld [smem:[#allocation0]]
  $region42: #{tpu_custom_call.1} parent=0
    _
  %s8 = ssub.s32 1, %s6
  %s9 = scalar_select 0, %s8, %s6
  $region1: #{tpu_custom_call.1} parent=0
    #allocation2 [shape = 'u8[4096]{0}', space=vmem, size = 0x1000, scoped, tag = 'input window, operand 0, single buffered']
    #allocation3 [shape = 's32[1]{0}', space=sflag, size = 0x4, scoped, tag = 'scoped memory for tpu_custom_call.1']
    #allocation4 [shape = 's32[1]{0}', space=sflag, size = 0x4, scoped, tag = 'scoped memory for tpu_custom_call.1']
    #allocation5 [shape = 'u8[16384]{0}', space=vmem, size = 0x4000, scoped, tag = 'input window, operand 1, single buffered']
    #allocation6 [shape = 's32[1]{0}', space=sflag, size = 0x4, scoped, tag = 'scoped memory for tpu_custom_call.1']
    #allocation7 [shape = 'u8[32768]{0}', space=vmem, size = 0x8000, scoped, tag = 'input window, operand 3, single buffered']
    #allocation8 [shape = 'u8[2048]{0}', space=vmem, size = 0x800, scoped, tag = 'output window, operand 0, single buffered']
    %10 = vsyncpa [#allocation3], 0
    %11 = vsyncpa [#allocation6], 0
    %12 = vsyncpa [#allocation4], 0
    // Predicated region
    $region2: #{tpu_custom_call.1} parent=1 // pred_check
      _
    $region3: #{tpu_custom_call.1} parent=1 // pred_check_branch
      %14 = sbr.rel (0) target = $region5
    $region4: #{tpu_custom_call.1} parent=1 // pred_region
      %16 = vsyncadd [#allocation3], 0
      %s18 = sshll.u32 %s0, 4
      %s19 = int_to_ptr.hbm [resolvable:$true] %s18
      %s20 = sshll.u32 [#allocation2], 4
      %s21 = int_to_ptr.vmem [resolvable:$true] %s20
      %23 = dma.hbm_to_vmem [thread:$0]  %s19, 128, %s21, [#allocation3]
    $region5: #{tpu_custom_call.1} parent=1 // pred_fallthru
      _
    // Predicated region
    $region6: #{tpu_custom_call.1} parent=1 // pred_check
      _
    $region7: #{tpu_custom_call.1} parent=1 // pred_check_branch
      %25 = sbr.rel (0) target = $region9
    $region8: #{tpu_custom_call.1} parent=1 // pred_region
      %27 = vsyncadd [#allocation6], 0
      %s28 = sshll.u32 %s1, 4
      %s29 = int_to_ptr.hbm [resolvable:$true] %s28
      %s30 = sshll.u32 [#allocation5], 4
      %s31 = int_to_ptr.vmem [resolvable:$true] %s30
      %36 = dma.hbm_to_vmem [thread:$0]  %s29, 512, %s31, [#allocation6], 64, 64, 4
    $region9: #{tpu_custom_call.1} parent=1 // pred_fallthru
      _
    // Predicated region
    $region10: #{tpu_custom_call.1} parent=1 // pred_check
      _
    $region11: #{tpu_custom_call.1} parent=1 // pred_check_branch
      %38 = sbr.rel (0) target = $region13
    $region12: #{tpu_custom_call.1} parent=1 // pred_region
      _
    $region13: #{tpu_custom_call.1} parent=1 // pred_fallthru
      _
    // Predicated region
    $region14: #{tpu_custom_call.1} parent=1 // pred_check
      _
    $region15: #{tpu_custom_call.1} parent=1 // pred_check_branch
      %40 = sbr.rel (0) target = $region17
    $region16: #{tpu_custom_call.1} parent=1 // pred_region
      %42 = vsyncadd [#allocation6], 0
      %s43 = sshll.u32 %s3, 4
      %s44 = int_to_ptr.hbm [resolvable:$true] %s43
      %s45 = sshll.u32 [#allocation7], 4
      %s46 = int_to_ptr.vmem [resolvable:$true] %s45
      %51 = dma.hbm_to_vmem [thread:$0]  %s44, 1024, %s46, [#allocation6], 64, 64, 4
    $region17: #{tpu_custom_call.1} parent=1 // pred_fallthru
      _
    // Predicated region
    $region18: #{tpu_custom_call.1} parent=1 // pred_check
      _
    $region19: #{tpu_custom_call.1} parent=1 // pred_check_branch
      %53 = sbr.rel (0) target = $region21
    $region20: #{tpu_custom_call.1} parent=1 // pred_region
      _
    $region21: #{tpu_custom_call.1} parent=1 // pred_fallthru
      _
    // Predicated region
    $region22: #{tpu_custom_call.1} parent=1 // pred_check
      _
    $region23: #{tpu_custom_call.1} parent=1 // pred_check_branch
      %55 = sbr.rel (0) target = $region25
    $region24: #{tpu_custom_call.1} parent=1 // pred_region
      %57 = dma.done [#allocation3], 128
    $region25: #{tpu_custom_call.1} parent=1 // pred_fallthru
      _
    // Predicated region
    $region26: #{tpu_custom_call.1} parent=1 // pred_check
      _
    $region27: #{tpu_custom_call.1} parent=1 // pred_check_branch
      %59 = sbr.rel (0) target = $region29
    $region28: #{tpu_custom_call.1} parent=1 // pred_region
      %61 = dma.done [#allocation6], 512
    $region29: #{tpu_custom_call.1} parent=1 // pred_fallthru
      _
    // Predicated region
    $region30: #{tpu_custom_call.1} parent=1 // pred_check
      _
    $region31: #{tpu_custom_call.1} parent=1 // pred_check_branch
      %63 = sbr.rel (0) target = $region33
    $region32: #{tpu_custom_call.1} parent=1 // pred_region
      %65 = dma.done [#allocation6], 1024
    $region33: #{tpu_custom_call.1} parent=1 // pred_fallthru
      _
    %v67 = vld [vmem:[#allocation2] sm:$0xff]
    %v68 = vpack.c.bf16 %v67, %v67
    %v69 = vld [vmem:[#allocation5] sm:$0xf]
    %v70 = vld [vmem:[#allocation5 + $0x4] sm:$0xf]
    %v71 = vld [vmem:[#allocation5 + $0x8] sm:$0xf]
    %v72 = vld [vmem:[#allocation5 + $0xc] sm:$0xf]
    %v73 = vld [vmem:[#allocation5 + $0x10] sm:$0xf]
    %v74 = vld [vmem:[#allocation5 + $0x14] sm:$0xf]
    %v75 = vld [vmem:[#allocation5 + $0x18] sm:$0xf]
    %v76 = vld [vmem:[#allocation5 + $0x1c] sm:$0xf]
    %v77 = vld [vmem:[%s2] sm:$0x1]
    %v79 = vperm.slane %v77, 0
    %v89 = vunpack.c.l.b16 %v69
    %v90 = vunpack.c.l.b16 %v70
    %v91 = vunpack.c.l.b16 %v71
    %v92 = vunpack.c.l.b16 %v72
    %v93 = vunpack.c.l.b16 %v73
    %v94 = vunpack.c.l.b16 %v74
    %v95 = vunpack.c.l.b16 %v75
    %v96 = vunpack.c.l.b16 %v76
    %v97 = vpack.c.b16 %v90, %v89
    %v98 = vpack.c.b16 %v92, %v91
    %v99 = vpack.c.b16 %v94, %v93
    %v100 = vpack.c.b16 %v96, %v95
    %vm105 = vcmask 523264
    %v107 = vsel %vm105, %v68, 0
    %109 = vmatpush.bf16.msra.mxu0 0
    %110 = vmatpush.bf16.msra.mxu0 0
    %111 = vmatpush.bf16.msra.mxu0 0
    %112 = vmatpush.bf16.msra.mxu0 0
    %113 = vmatpush.bf16.msra.mxu0 %v100
    %114 = vmatpush.bf16.msra.mxu0 %v99
    %115 = vmatpush.bf16.msra.mxu0 %v98
    %116 = vmatpush.bf16.msra.mxu0 %v97
    %117 = vmatmul.bf16.gmra.mxu0 %v107
    %v118 = vpop.f32.mrf.mxu0
    %v119 = vadd.f32 %v79, %v118
    %v120 = vpop.f32.mrf.mxu0
    %121 = vdwg.mxu0
    %v122 = vmax.f32 %v119, 0.0
    %v123 = vpack.c.bf16 %v122, %v122
    %v124 = vld [vmem:[#allocation7] sm:$0xf]
    %v125 = vld [vmem:[#allocation7 + $0x4] sm:$0xf]
    %v126 = vld [vmem:[#allocation7 + $0x8] sm:$0xf]
    %v127 = vld [vmem:[#allocation7 + $0xc] sm:$0xf]
    %v128 = vld [vmem:[#allocation7 + $0x10] sm:$0xf]
    %v129 = vld [vmem:[#allocation7 + $0x14] sm:$0xf]
    %v130 = vld [vmem:[#allocation7 + $0x18] sm:$0xf]
    %v131 = vld [vmem:[#allocation7 + $0x1c] sm:$0xf]
    %v132 = vld [vmem:[#allocation7 + $0x20] sm:$0xf]
    %v133 = vld [vmem:[#allocation7 + $0x24] sm:$0xf]
    %v134 = vld [vmem:[#allocation7 + $0x28] sm:$0xf]
    %v135 = vld [vmem:[#allocation7 + $0x2c] sm:$0xf]
    %v136 = vld [vmem:[#allocation7 + $0x30] sm:$0xf]
    %v137 = vld [vmem:[#allocation7 + $0x34] sm:$0xf]
    %v138 = vld [vmem:[#allocation7 + $0x38] sm:$0xf]
    %v139 = vld [vmem:[#allocation7 + $0x3c] sm:$0xf]
    %v140 = vld [vmem:[%s4] sm:$0x1]
    %v142 = vperm.slane %v140, 0
    %v160 = vunpack.c.l.b16 %v124
    %v161 = vunpack.c.l.b16 %v125
    %v162 = vunpack.c.l.b16 %v126
    %v163 = vunpack.c.l.b16 %v127
    %v164 = vunpack.c.l.b16 %v128
    %v165 = vunpack.c.l.b16 %v129
    %v166 = vunpack.c.l.b16 %v130
    %v167 = vunpack.c.l.b16 %v131
    %v168 = vunpack.c.l.b16 %v132
    %v169 = vunpack.c.l.b16 %v133
    %v170 = vunpack.c.l.b16 %v134
    %v171 = vunpack.c.l.b16 %v135
    %v172 = vunpack.c.l.b16 %v136
    %v173 = vunpack.c.l.b16 %v137
    %v174 = vunpack.c.l.b16 %v138
    %v175 = vunpack.c.l.b16 %v139
    %v176 = vpack.c.b16 %v161, %v160
    %v177 = vpack.c.b16 %v163, %v162
    %v178 = vpack.c.b16 %v165, %v164
    %v179 = vpack.c.b16 %v167, %v166
    %v180 = vpack.c.b16 %v169, %v168
    %v181 = vpack.c.b16 %v171, %v170
    %v182 = vpack.c.b16 %v173, %v172
    %v183 = vpack.c.b16 %v175, %v174
    %192 = vmatpush.bf16.msra.mxu0 %v183
    %193 = vmatpush.bf16.msra.mxu0 %v182
    %194 = vmatpush.bf16.msra.mxu0 %v181
    %195 = vmatpush.bf16.msra.mxu0 %v180
    %196 = vmatpush.bf16.msra.mxu0 %v179
    %197 = vmatpush.bf16.msra.mxu0 %v178
    %198 = vmatpush.bf16.msra.mxu0 %v177
    %199 = vmatpush.bf16.msra.mxu0 %v176
    %200 = vmatmul.bf16.gmra.mxu0 %v123
    %v201 = vpop.f32.mrf.mxu0
    %v202 = vadd.f32 %v142, %v201
    %v203 = vpop.f32.mrf.mxu0
    %204 = vdwg.mxu0
    %v205 = vpack.c.bf16 %v202, %v202
    %206 = vst [vmem:[#allocation8] sm:$0xf] %v205
    // Predicated region
    $region34: #{tpu_custom_call.1} parent=1 // pred_check
      _
    $region35: #{tpu_custom_call.1} parent=1 // pred_check_branch
      %208 = sbr.rel (0) target = $region37
    $region36: #{tpu_custom_call.1} parent=1 // pred_region
      %210 = vsyncadd [#allocation4], 0
      %s212 = sshll.u32 [#allocation8], 4
      %s213 = int_to_ptr.vmem [resolvable:$true] %s212
      %s214 = sshll.u32 %s5, 4
      %s215 = int_to_ptr.hbm [resolvable:$true] %s214
      %217 = dma.vmem_to_hbm [thread:$0]  %s213, 64, %s215, [#allocation4]
    $region37: #{tpu_custom_call.1} parent=1 // pred_fallthru
      _
    // Predicated region
    $region38: #{tpu_custom_call.1} parent=1 // pred_check
      _
    $region39: #{tpu_custom_call.1} parent=1 // pred_check_branch
      %219 = sbr.rel (0) target = $region41
    $region40: #{tpu_custom_call.1} parent=1 // pred_region
      %221 = dma.done [#allocation4], 64
    $region41: #{tpu_custom_call.1} parent=1 // pred_fallthru
      _
    %222 = vsyncpa [#allocation3], 1
    %223 = vsyncpa [#allocation6], 1
    %224 = vsyncpa [#allocation4], 1

</llo_original>
